<compile_context>
chip_gen: v6e
topology: v6e:2x2x1
jax: 0.10.0
libtpu: 0.0.40
codegen_flags: <defaults>
</compile_context>

<pallas_src>
import functools

import jax
import jax.numpy as jnp
from jax.experimental import pallas as pl
from jax.experimental.pallas import tpu as pltpu

EPS = 1e-5  # PyTorch InstanceNorm2d default eps (affine=False by default)


def _round_up(x, m):
    return (x + m - 1) // m * m


def _downsample_kernel(p_ref, w_ref, o_ref, *scratch, p_tile, num_p_tiles,
                       num_k_tiles, p_valid, inv_p, eps):
    # p_ref:  (Kt, Pt)      bf16 im2col patch tile for this (n, c-tile, p-tile, k-tile)
    # w_ref:  (Ct, Kt)      bf16 conv weight tile
    # o_ref:  (Ct, P_pad)   pre-norm staging + final output; VMEM-resident across
    #                       the P and K grid axes (index_map constant there)
    # scratch: [acc_ref (Ct, Pt) f32 iff num_k_tiles > 1], sum_ref (Ct, 1) f32
    if num_k_tiles > 1:
        acc_ref, sum_ref = scratch
    else:
        (sum_ref,) = scratch
        acc_ref = None

    pi = pl.program_id(2)
    ki = pl.program_id(3)

    @pl.when((pi == 0) & (ki == 0))
    def _init():
        sum_ref[...] = jnp.zeros_like(sum_ref)

    # (Ct, Kt) @ (Kt, Pt) on the MXU, f32 accumulation.  Lane dim = P (large,
    # 128-multiple) -> unmasked stores and no wrapper transpose back to NCHW.
    partial = jnp.dot(w_ref[...], p_ref[...], preferred_element_type=jnp.float32)

    def emit(y):
        # Padded P columns are exactly zero, so summing all columns and dividing
        # by the true P later gives the correct mean.  Stage the pre-norm tile
        # directly in o_ref (no extra y_buf copy).
        sum_ref[...] += jnp.sum(y, axis=1, keepdims=True)
        off = pl.multiple_of(pi * p_tile, 128)
        o_ref[:, pl.ds(off, p_tile)] = y.astype(o_ref.dtype)

    if num_k_tiles == 1:
        emit(partial)
    else:
        @pl.when(ki == 0)
        def _acc_init():
            acc_ref[...] = partial

        @pl.when(ki > 0)
        def _acc_add():
            acc_ref[...] += partial

        @pl.when(ki == num_k_tiles - 1)
        def _acc_emit():
            emit(acc_ref[...])

    @pl.when((pi == num_p_tiles - 1) & (ki == num_k_tiles - 1))
    def _finalize():
        mean = sum_ref[...] * inv_p                          # (Ct, 1) f32

        # Two-pass variance over the VMEM-staged pre-norm tiles; padded P
        # columns masked out of the statistic.
        def var_body(t, acc):
            off = pl.multiple_of(t * p_tile, 128)
            yt = o_ref[:, pl.ds(off, p_tile)].astype(jnp.float32)
            col = jax.lax.broadcasted_iota(jnp.int32, yt.shape, 1) + t * p_tile
            d = jnp.where(col < p_valid, yt - mean, 0.0)
            return acc + jnp.sum(d * d, axis=1, keepdims=True)

        var = jax.lax.fori_loop(0, num_p_tiles, var_body,
                                jnp.zeros_like(mean)) * inv_p
        inv_std = jax.lax.rsqrt(var + eps)

        # Normalize + ReLU in place (fori_loop keeps vreg pressure flat).
        def norm_body(t, carry):
            off = pl.multiple_of(t * p_tile, 128)
            yt = o_ref[:, pl.ds(off, p_tile)].astype(jnp.float32)
            o_ref[:, pl.ds(off, p_tile)] = jnp.maximum(
                (yt - mean) * inv_std, 0.0).astype(o_ref.dtype)
            return carry

        jax.lax.fori_loop(0, num_p_tiles, norm_body, 0)


def _im2col_kp(x, k, stride, pad):
    # (N, C, H, W) -> (N, K, P); K = C*k*k ordered (c, di, dj) to match the
    # torch OIHW weight reshape; P = H_out*W_out row-major (flattened NCHW).
    N, C, H, W = x.shape
    H_out = (H + 2 * pad - k) // stride + 1
    W_out = (W + 2 * pad - k) // stride + 1
    xp = jnp.pad(x, ((0, 0), (0, 0), (pad, pad), (pad, pad)))
    slices = []
    for di in range(k):
        for dj in range(k):
            slices.append(
                xp[:, :, di:di + stride * H_out:stride, dj:dj + stride * W_out:stride])
    pat = jnp.stack(slices, axis=2)                    # (N, C, k*k, H_out, W_out)
    pat = pat.reshape(N, C * k * k, H_out * W_out)     # (N, K, P) -- natural layout
    return pat, H_out, W_out


def _vmem_limit_bytes(in_bytes, w_bytes, out_bytes, acc_bytes, misc_bytes):
    est = in_bytes + w_bytes + out_bytes + acc_bytes + misc_bytes + (4 << 20)
    try:
        cap = int(pltpu.get_tpu_info().vmem_capacity_bytes) * 7 // 8
    except Exception:
        cap = 56 << 20   # safe on every generation (v7x physical VMEM = 64 MiB)
    return int(min(max(est, 32 << 20), cap))


def downsample_block(x, weight, bias=None, *, k=4, stride=2, pad=1,
                     compute_dtype=jnp.bfloat16, out_dtype=None,
                     p_tile=2048, c_tile=128, k_tile=4096):
    """ReLU(InstanceNorm2d(Conv2d(x))) in NCHW, matching the PyTorch block.

    x: (N, C_in, H, W); weight: (C_out, C_in, k, k); bias: (C_out,) (dropped:
    it is cancelled exactly by the affine=False InstanceNorm mean subtraction).
    """
    N, C_in, H, W = x.shape
    C_out = weight.shape[0]
    out_dtype = x.dtype if out_dtype is None else out_dtype
    del bias  # cancelled exactly by InstanceNorm(affine=False) mean subtraction

    # Build im2col patches in the compute dtype so the materialized (N, K, P)
    # array costs half the HBM traffic of an f32 one.
    xc = x.astype(compute_dtype)
    patches, H_out, W_out = _im2col_kp(xc, k, stride, pad)   # (N, K, P)
    K = C_in * k * k
    P = H_out * W_out

    # ---- tiling -------------------------------------------------------------
    # K (contraction): single tile unless it would blow up the input double
    # buffer (deep layers); a tiled Kt must be a lane multiple (128).
    K_pad0 = _round_up(K, 16)
    if K_pad0 <= k_tile:
        Kt = K_pad = K_pad0
    else:
        Kt = _round_up(k_tile, 128)
        K_pad = _round_up(K, Kt)
    num_k_tiles = K_pad // Kt

    # C_out: tiled so the P-resident output block stays small (v7x: 64 MiB,
    # 2 TCs) and the C axis can be megacore-sharded when N is small.
    C_pad0 = _round_up(C_out, 16)
    if C_pad0 <= c_tile:
        Ct = C_pad = C_pad0
    else:
        Ct = _round_up(c_tile, 16)
        C_pad = _round_up(C_out, Ct)
    num_c_tiles = C_pad // Ct

    # P (spatial): big tiles amortize the ~0.35us/step grid overhead; the
    # P-resident output does not grow with Pt, only the small input buffer does.
    if P <= p_tile:
        Pt = P_pad = _round_up(P, 128)
    else:
        Pt = _round_up(p_tile, 128)
        P_pad = _round_up(P, Pt)
    num_p_tiles = P_pad // Pt

    patches = jnp.pad(patches, ((0, 0), (0, K_pad - K), (0, P_pad - P)))
    w_mat = weight.reshape(C_out, K).astype(compute_dtype)
    w_mat = jnp.pad(w_mat, ((0, C_pad - C_out), (0, K_pad - K)))

    kernel = functools.partial(
        _downsample_kernel, p_tile=Pt, num_p_tiles=num_p_tiles,
        num_k_tiles=num_k_tiles, p_valid=P, inv_p=1.0 / float(P), eps=EPS)

    scratch_shapes = []
    if num_k_tiles > 1:
        scratch_shapes.append(pltpu.VMEM((Ct, Pt), jnp.float32))
    scratch_shapes.append(pltpu.VMEM((Ct, 1), jnp.float32))

    in_isz = jnp.dtype(compute_dtype).itemsize
    out_isz = jnp.dtype(out_dtype).itemsize
    vmem_limit = _vmem_limit_bytes(
        in_bytes=2 * Kt * Pt * in_isz,
        w_bytes=2 * Ct * Kt * in_isz,
        out_bytes=2 * Ct * P_pad * out_isz,
        acc_bytes=(Ct * Pt * 4 if num_k_tiles > 1 else 0),
        misc_bytes=Ct * 128 * 4)

    out = pl.pallas_call(
        kernel,
        out_shape=jax.ShapeDtypeStruct((N, C_pad, P_pad), out_dtype),
        grid_spec=pltpu.PrefetchScalarGridSpec(
            num_scalar_prefetch=0,
            grid=(N, num_c_tiles, num_p_tiles, num_k_tiles),
            in_specs=[
                pl.BlockSpec((pl.Squeezed(), Kt, Pt),
                             lambda n, c, p, kk: (n, kk, p)),
                # Constant index across N/P (and K when single K tile) -> the
                # weight tile stays VMEM-resident instead of being refetched.
                pl.BlockSpec((Ct, Kt), lambda n, c, p, kk: (c, kk)),
            ],
            out_specs=pl.BlockSpec((pl.Squeezed(), Ct, P_pad),
                                   lambda n, c, p, kk: (n, c, 0)),
            scratch_shapes=scratch_shapes,
        ),
        compiler_params=pltpu.CompilerParams(
            dimension_semantics=("parallel", "parallel", "arbitrary",
                                 "arbitrary"),
            vmem_limit_bytes=vmem_limit),
    )(patches, w_mat)

    # (N, C_pad, P_pad) -> (N, C_out, H_out, W_out): slice padding, no transpose.
    out = out[:, :C_out, :P]
    return out.reshape(N, C_out, H_out, W_out)


def _reference(x, weight, bias, *, stride=2, pad=1):
    # Pure-JAX reference (Conv2d -> InstanceNorm2d(affine=False) -> ReLU).
    y = jax.lax.conv_general_dilated(
        x, weight, window_strides=(stride, stride),
        padding=((pad, pad), (pad, pad)),
        dimension_numbers=("NCHW", "OIHW", "NCHW"))
    y = y + bias.reshape(1, -1, 1, 1)
    mean = jnp.mean(y, axis=(2, 3), keepdims=True)
    var = jnp.mean((y - mean) ** 2, axis=(2, 3), keepdims=True)
    y = (y - mean) * jax.lax.rsqrt(var + EPS)
    return jnp.maximum(y, 0.0)


if __name__ == "__main__":
    key = jax.random.PRNGKey(0)

    def run_case(case_key, N, C_in, C_out, H, W, **tile_kwargs):
        k_x, k_w, k_b = jax.random.split(case_key, 3)
        ksize = 4
        x = jax.random.normal(k_x, (N, C_in, H, W), dtype=jnp.float32)
        fan_in = C_in * ksize * ksize
        bound = 1.0 / (fan_in ** 0.5)
        weight = jax.random.uniform(k_w, (C_out, C_in, ksize, ksize),
                                    minval=-bound, maxval=bound,
                                    dtype=jnp.float32)
        bias = jax.random.uniform(k_b, (C_out,), minval=-bound, maxval=bound,
                                  dtype=jnp.float32)

        out = jax.block_until_ready(
            downsample_block(x, weight, bias, **tile_kwargs))
        H_out = (H + 2 - ksize) // 2 + 1
        W_out = (W + 2 - ksize) // 2 + 1
        assert out.shape == (N, C_out, H_out, W_out), out.shape

        # Reference applies the same bf16 rounding to the matmul operands that
        # the kernel does; accumulation and the InstanceNorm stats are f32 in
        # both paths.
        x_r = x.astype(jnp.bfloat16).astype(jnp.float32)
        w_r = weight.astype(jnp.bfloat16).astype(jnp.float32)
        ref = _reference(x_r, w_r, bias)
        err = float(jnp.max(jnp.abs(out.astype(jnp.float32) - ref)))
        assert err < 2e-4, err

    k0, k1 = jax.random.split(key)
    # Default path: single C/K/P tile.
    run_case(k0, N=2, C_in=4, C_out=8, H=16, W=16)
    # Exercise the tiled paths: 2 C-tiles, 3 P-tiles, 2 K-tiles.
    run_case(k1, N=1, C_in=16, C_out=24, H=34, W=34,
             p_tile=128, c_tile=16, k_tile=128)

    print("KERNEL_OK")
</pallas_src>

<mosaic_0001>
module attributes {stable_mosaic.version = 11 : i64} {
  func.func @_downsample_kernel(%arg0: i32, %arg1: i32, %arg2: i32, %arg3: i32, %arg4: memref<1x64x128xbf16, #tpu.memory_space<vmem>>, %arg5: memref<16x64xbf16, #tpu.memory_space<vmem>>, %arg6: memref<1x16x128xf32, #tpu.memory_space<vmem>>, %arg7: memref<16x1xf32, #tpu.memory_space<vmem>>) attributes {dimension_semantics = [#tpu.dimension_semantics<parallel>, #tpu.dimension_semantics<parallel>, #tpu.dimension_semantics<arbitrary>, #tpu.dimension_semantics<arbitrary>], iteration_bounds = array<i64: 2, 1, 1, 1>, scalar_prefetch = 0 : i64, scratch_operands = 1 : i64, tpu.core_type = #tpu.core_type<tc>, window_params = [{transform_indices = @transform_0, window_bounds = array<i64: 1, 64, 128>}, {transform_indices = @transform_1, window_bounds = array<i64: 16, 64>}, {transform_indices = @transform_2, window_bounds = array<i64: 1, 16, 128>}]} {
    %c0_i32 = arith.constant 0 : i32
    %0 = arith.cmpi eq, %arg2, %c0_i32 : i32
    %c0_i32_0 = arith.constant 0 : i32
    %1 = arith.cmpi eq, %arg3, %c0_i32_0 : i32
    %2 = arith.andi %0, %1 : i1
    %3 = arith.extui %2 : i1 to i32
    %c0_i32_1 = arith.constant 0 : i32
    %4 = arith.cmpi ne, %3, %c0_i32_1 : i32
    scf.if %4 {
      %cst_16 = arith.constant 0.000000e+00 : f32
      %25 = vector.broadcast %cst_16 : f32 to vector<16x1xf32>
      %c0_17 = arith.constant 0 : index
      %c0_18 = arith.constant 0 : index
      %26 = vector.load %arg7[%c0_17, %c0_18] : memref<16x1xf32, #tpu.memory_space<vmem>>, vector<16x1xf32>
      tpu.vector_store %arg7[%c0_17, %c0_18], %25 {strides = array<i32>} : memref<16x1xf32, #tpu.memory_space<vmem>>, vector<16x1xf32>,
    } else {
    }
    %c0 = arith.constant 0 : index
    %c0_2 = arith.constant 0 : index
    %5 = vector.load %arg5[%c0, %c0_2] : memref<16x64xbf16, #tpu.memory_space<vmem>>, vector<16x64xbf16>
    %c0_3 = arith.constant 0 : index
    %c0_4 = arith.constant 0 : index
    %c0_5 = arith.constant 0 : index
    %6 = vector.load %arg4[%c0_3, %c0_4, %c0_5] : memref<1x64x128xbf16, #tpu.memory_space<vmem>>, vector<1x64x128xbf16>
    %7 = vector.shape_cast %6 : vector<1x64x128xbf16> to vector<64x128xbf16>
    %cst = arith.constant dense<0.000000e+00> : vector<16x128xf32>
    %8 = tpu.matmul %5, %7, %cst {dimension_numbers = #tpu.dot_dimension_numbers<[1], [0], [0], [1], [0, 0, 1, 1], [], []>} : vector<16x64xbf16>, vector<64x128xbf16>, vector<16x128xf32> -> vector<16x128xf32>
    %c0_6 = arith.constant 0 : index
    %c0_7 = arith.constant 0 : index
    %9 = vector.load %arg7[%c0_6, %c0_7] : memref<16x1xf32, #tpu.memory_space<vmem>>, vector<16x1xf32>
    %cst_8 = arith.constant dense<0.000000e+00> : vector<16xf32>
    %10 = vector.multi_reduction <add>, %8, %cst_8 [1] : vector<16x128xf32> to vector<16xf32>
    %11 = vector.shape_cast %10 : vector<16xf32> to vector<16x1xf32>
    %12 = arith.addf %9, %11 : vector<16x1xf32>
    %c0_9 = arith.constant 0 : index
    %c0_10 = arith.constant 0 : index
    %13 = vector.load %arg7[%c0_9, %c0_10] : memref<16x1xf32, #tpu.memory_space<vmem>>, vector<16x1xf32>
    tpu.vector_store %arg7[%c0_9, %c0_10], %12 {strides = array<i32>} : memref<16x1xf32, #tpu.memory_space<vmem>>, vector<16x1xf32>,
    %c128_i32 = arith.constant 128 : i32
    %14 = arith.muli %arg2, %c128_i32 : i32
    %15 = tpu.assume_multiple %14, 128 : i32
    %c0_11 = arith.constant 0 : index
    %c0_12 = arith.constant 0 : index
    %16 = arith.index_cast %15 : i32 to index
    %17 = vector.load %arg6[%c0_11, %c0_12, %16] : memref<1x16x128xf32, #tpu.memory_space<vmem>>, vector<1x16x128xf32>
    %18 = vector.shape_cast %17 : vector<1x16x128xf32> to vector<16x128xf32>
    %19 = vector.shape_cast %8 : vector<16x128xf32> to vector<1x16x128xf32>
    tpu.vector_store %arg6[%c0_11, %c0_12, %16], %19 {strides = array<i32>} : memref<1x16x128xf32, #tpu.memory_space<vmem>>, vector<1x16x128xf32>,
    %c0_i32_13 = arith.constant 0 : i32
    %20 = arith.cmpi eq, %arg2, %c0_i32_13 : i32
    %c0_i32_14 = arith.constant 0 : i32
    %21 = arith.cmpi eq, %arg3, %c0_i32_14 : i32
    %22 = arith.andi %20, %21 : i1
    %23 = arith.extui %22 : i1 to i32
    %c0_i32_15 = arith.constant 0 : i32
    %24 = arith.cmpi ne, %23, %c0_i32_15 : i32
    scf.if %24 {
      %c0_16 = arith.constant 0 : index
      %c0_17 = arith.constant 0 : index
      %25 = vector.load %arg7[%c0_16, %c0_17] : memref<16x1xf32, #tpu.memory_space<vmem>>, vector<16x1xf32>
      %cst_18 = arith.constant 1.562500e-02 : f32
      %26 = vector.broadcast %cst_18 : f32 to vector<16x1xf32>
      %27 = arith.mulf %25, %26 : vector<16x1xf32>
      %cst_19 = arith.constant 0.000000e+00 : f32
      %28 = vector.broadcast %cst_19 : f32 to vector<16x1xf32>
      %c0_i32_20 = arith.constant 0 : i32
      %c128_i32_21 = arith.constant 128 : i32
      %29 = arith.muli %c0_i32_20, %c128_i32_21 : i32
      %30 = tpu.assume_multiple %29, 128 : i32
      %c0_22 = arith.constant 0 : index
      %c0_23 = arith.constant 0 : index
      %31 = arith.index_cast %30 : i32 to index
      %32 = vector.load %arg6[%c0_22, %c0_23, %31] : memref<1x16x128xf32, #tpu.memory_space<vmem>>, vector<1x16x128xf32>
      %33 = vector.shape_cast %32 : vector<1x16x128xf32> to vector<16x128xf32>
      %34 = tpu.iota {dimensions = array<i32: 1>} : vector<16x128xi32>
      %c128_i32_24 = arith.constant 128 : i32
      %35 = arith.muli %c0_i32_20, %c128_i32_24 : i32
      %36 = vector.broadcast %35 : i32 to vector<16x128xi32>
      %37 = arith.addi %34, %36 : vector<16x128xi32>
      %c64_i32 = arith.constant 64 : i32
      %38 = vector.broadcast %c64_i32 : i32 to vector<16x128xi32>
      %39 = arith.cmpi slt, %37, %38 : vector<16x128xi32>
      %40 = vector.broadcast %27 : vector<16x1xf32> to vector<16x128xf32>
      %41 = arith.subf %33, %40 : vector<16x128xf32>
      %cst_25 = arith.constant 0.000000e+00 : f32
      %42 = vector.broadcast %cst_25 : f32 to vector<16x128xf32>
      %43 = arith.select %39, %41, %42 : vector<16x128xi1>, vector<16x128xf32>
      %44 = arith.mulf %43, %43 : vector<16x128xf32>
      %cst_26 = arith.constant dense<0.000000e+00> : vector<16xf32>
      %45 = vector.multi_reduction <add>, %44, %cst_26 [1] : vector<16x128xf32> to vector<16xf32>
      %46 = vector.shape_cast %45 : vector<16xf32> to vector<16x1xf32>
      %47 = arith.addf %28, %46 : vector<16x1xf32>
      %c1_i32 = arith.constant 1 : i32
      %cst_27 = arith.constant 1.562500e-02 : f32
      %48 = vector.broadcast %cst_27 : f32 to vector<16x1xf32>
      %49 = arith.mulf %47, %48 : vector<16x1xf32>
      %cst_28 = arith.constant 9.99999974E-6 : f32
      %50 = vector.broadcast %cst_28 : f32 to vector<16x1xf32>
      %51 = arith.addf %49, %50 : vector<16x1xf32>
      %52 = math.rsqrt %51 : vector<16x1xf32>
      %c0_i32_29 = arith.constant 0 : i32
      %c128_i32_30 = arith.constant 128 : i32
      %53 = arith.muli %c0_i32_29, %c128_i32_30 : i32
      %54 = tpu.assume_multiple %53, 128 : i32
      %c0_31 = arith.constant 0 : index
      %c0_32 = arith.constant 0 : index
      %55 = arith.index_cast %54 : i32 to index
      %56 = vector.load %arg6[%c0_31, %c0_32, %55] : memref<1x16x128xf32, #tpu.memory_space<vmem>>, vector<1x16x128xf32>
      %57 = vector.shape_cast %56 : vector<1x16x128xf32> to vector<16x128xf32>
      %58 = vector.broadcast %27 : vector<16x1xf32> to vector<16x128xf32>
      %59 = arith.subf %57, %58 : vector<16x128xf32>
      %60 = vector.broadcast %52 : vector<16x1xf32> to vector<16x128xf32>
      %61 = arith.mulf %59, %60 : vector<16x128xf32>
      %cst_33 = arith.constant 0.000000e+00 : f32
      %62 = vector.broadcast %cst_33 : f32 to vector<16x128xf32>
      %63 = arith.maximumf %61, %62 : vector<16x128xf32>
      %c0_34 = arith.constant 0 : index
      %c0_35 = arith.constant 0 : index
      %64 = arith.index_cast %54 : i32 to index
      %65 = vector.load %arg6[%c0_34, %c0_35, %64] : memref<1x16x128xf32, #tpu.memory_space<vmem>>, vector<1x16x128xf32>
      %66 = vector.shape_cast %65 : vector<1x16x128xf32> to vector<16x128xf32>
      %67 = vector.shape_cast %63 : vector<16x128xf32> to vector<1x16x128xf32>
      tpu.vector_store %arg6[%c0_34, %c0_35, %64], %67 {strides = array<i32>} : memref<1x16x128xf32, #tpu.memory_space<vmem>>, vector<1x16x128xf32>,
      %c1_i32_36 = arith.constant 1 : i32
    } else {
    }
    return
  }
  func.func @transform_0(%arg0: i32, %arg1: i32, %arg2: i32, %arg3: i32) -> (i32, i32, i32) {
    %c0_i32 = arith.constant 0 : i32
    return %arg0, %arg3, %arg2 : i32, i32, i32
  }
  func.func @transform_1(%arg0: i32, %arg1: i32, %arg2: i32, %arg3: i32) -> (i32, i32) {
    %c0_i32 = arith.constant 0 : i32
    return %arg1, %arg3 : i32, i32
  }
  func.func @transform_2(%arg0: i32, %arg1: i32, %arg2: i32, %arg3: i32) -> (i32, i32, i32) {
    %c0_i32 = arith.constant 0 : i32
    %c0_i32_0 = arith.constant 0 : i32
    return %arg0, %arg1, %c0_i32 : i32, i32, i32
  }
}

</mosaic_0001>

<llo_original>
// kernel: tpu_custom_call.1
$region0: #{tpu_custom_call.1}
  #allocation0 [shape = 'u32[]', space=smem, size = 0x4, offset = 0x4, fixed_abs, tag = 'smem constant byte address 0x4 - core index']
  #allocation1 [shape = 'u32[144,128]{1,0:T(1,128)}', space=vmem, size = 0x12000, scoped, tag = 'internal scratch']
  #allocation2 [shape = 'f32[16,1]{1,0:T(8,128)}', space=vmem, size = 0x2000, scoped, tag = 'scratch operand']
  %s0 = inlined_call_operand.hbm [shape: bf16[2,64,128], index: 0, kind: input, shape index: {}]
  %s1 = inlined_call_operand.hbm [shape: bf16[16,64], index: 1, kind: input, shape index: {}]
  %s2 = inlined_call_operand.hbm [shape: f32[2,16,128], index: 2, kind: output, shape index: {}]
  %s3 = sld [smem:[#allocation0]]
  $region57: #{tpu_custom_call.1} parent=0
    _
  %s5 = ssub.s32 1, %s3
  %s6 = scalar_select 0, %s5, %s3
  $region1: #{tpu_custom_call.1} parent=0
    #allocation3 [shape = 'u8[32768]{0}', space=vmem, size = 0x8000, scoped, tag = 'input window, operand 0']
    #allocation4 [shape = 's32[2]{0}', space=sflag, size = 0x8, scoped, tag = 'scoped memory for tpu_custom_call.1']
    #allocation5 [shape = 's32[2]{0}', space=sflag, size = 0x8, scoped, tag = 'scoped memory for tpu_custom_call.1']
    #allocation6 [shape = 'u8[4096]{0}', space=vmem, size = 0x1000, scoped, tag = 'input window, operand 1, single buffered']
    #allocation7 [shape = 's32[1]{0}', space=sflag, size = 0x4, scoped, tag = 'scoped memory for tpu_custom_call.1']
    #allocation8 [shape = 'u8[16384]{0}', space=vmem, size = 0x4000, scoped, tag = 'output window, operand 0']
    %7 = vsyncpa [#allocation4], 0
    %s8 = scalar_lea.sflag [#allocation4], 1
    %9 = vsyncpa %s8, 0
    %10 = vsyncpa [#allocation7], 0
    %11 = vsyncpa [#allocation5], 0
    %s12 = scalar_lea.sflag [#allocation5], 1
    %13 = vsyncpa %s12, 0
    loop: start=0, step=1, limit=4
    $region2: #{tpu_custom_call.1} parent=1 // loop_pre_header
      _
    $region3: #{tpu_custom_call.1} parent=1 // loop_header
      %s15 = sphi 0, %s19
      %p16 = scmp.ge.s32.totalorder %s15, 4
      %s22 = sphi 0, %s48
      %s23 = sphi 0, %s44
      %s24 = sphi 0, %s40
      %s25 = sphi 0, %s36
      %s26 = sphi 0, %s22
      %s27 = sphi 0, %s23
      %s28 = sphi 0, %s24
      %s29 = sphi 0, %s25
      %s30 = sphi 0, %s26
      %s31 = sphi 0, %s27
      %s32 = sphi 0, %s28
      %s33 = sphi 0, %s29
      %s55 = sphi 0, %s57
      %s58 = sphi 0, %s55
      %s59 = sphi 0, %s58
      %s75 = sphi 0, %s59
      %s83 = sphi 0, %s85
      %s86 = sphi 0, %s83
      %s87 = sphi 0, %s86
      %s103 = sphi 0, %s87
      %s111 = sphi 0, %s113
      %s114 = sphi 0, %s111
      %s115 = sphi 0, %s114
      %s131 = sphi 0, %s115
    $region4: #{tpu_custom_call.1} parent=1 // loop_header_branch
      %18 = sbr.rel (%p16) target = $region8
    $region5: #{tpu_custom_call.1} parent=1 // loop_body
      %s20 = ssub.s32 %s15, 1
      %s21 = ssub.s32 %s15, 2
      %s34 = sadd.s32 1, %s25
      %p35 = scmp.ge.s32.totalorder %s34, 1
      %s36 = scalar_select %p35, 0, %s34
      %s37 = sadd.s32 1, %s24
      %s38 = scalar_select %p35, %s37, %s24
      %p39 = scmp.ge.s32.totalorder %s38, 1
      %s40 = scalar_select %p39, 0, %s38
      %s41 = sadd.s32 1, %s23
      %s42 = scalar_select %p39, %s41, %s23
      %p43 = scmp.ge.s32.totalorder %s42, 1
      %s44 = scalar_select %p43, 0, %s42
      %s45 = sadd.s32 1, %s22
      %s46 = scalar_select %p43, %s45, %s22
      %p47 = scmp.ge.s32.totalorder %s46, 2
      %s48 = scalar_select %p47, 0, %s46
      %s49 = ssub.s32 %s22, %s48
      %s50 = ssub.s32 %s25, %s36
      %s51 = sor.u32 %s49, %s50
      %s52 = ssub.s32 %s24, %s40
      %s53 = sor.u32 %s51, %s52
      %p54 = scmp.eq.s32.totalorder %s53, 0
      %s56 = sadd.s32 %s55, 1
      %s57 = scalar_select %p54, %s55, %s56
      %p60 = pneg %p54
      %p61 = scmp.eq.s32.totalorder %s15, 1
      %p62 = por %p60, %p61
      %p63 = scmp.ne.s32.totalorder %s55, %s58
      %p64 = scmp.eq.s32.totalorder %s15, 0
      %p65 = por %p63, %p64
      %p66 = scmp.ne.s32.totalorder %s55, %s58
      %p67 = scmp.eq.s32.totalorder %s20, 1
      %p68 = por %p66, %p67
      %p69 = scmp.ne.s32.totalorder %s58, %s59
      %p70 = scmp.eq.s32.totalorder %s20, 0
      %p71 = por %p69, %p70
      %p72 = scmp.ne.s32.totalorder %s58, %s59
      %p73 = scmp.eq.s32.totalorder %s21, 1
      %p74 = por %p72, %p73
      %p76 = scmp.ne.s32.totalorder %s59, %s75
      %p77 = scmp.eq.s32.totalorder %s21, 0
      %p78 = por %p76, %p77
      %s79 = ssub.s32 %s23, %s44
      %s80 = ssub.s32 %s25, %s36
      %s81 = sor.u32 %s79, %s80
      %p82 = scmp.eq.s32.totalorder %s81, 0
      %s84 = sadd.s32 %s83, 1
      %s85 = scalar_select %p82, %s83, %s84
      %p88 = pneg %p82
      %p89 = scmp.eq.s32.totalorder %s15, 1
      %p90 = por %p88, %p89
      %p91 = scmp.ne.s32.totalorder %s83, %s86
      %p92 = scmp.eq.s32.totalorder %s15, 0
      %p93 = por %p91, %p92
      %p94 = scmp.ne.s32.totalorder %s83, %s86
      %p95 = scmp.eq.s32.totalorder %s20, 1
      %p96 = por %p94, %p95
      %p97 = scmp.ne.s32.totalorder %s86, %s87
      %p98 = scmp.eq.s32.totalorder %s20, 0
      %p99 = por %p97, %p98
      %p100 = scmp.ne.s32.totalorder %s86, %s87
      %p101 = scmp.eq.s32.totalorder %s21, 1
      %p102 = por %p100, %p101
      %p104 = scmp.ne.s32.totalorder %s87, %s103
      %p105 = scmp.eq.s32.totalorder %s21, 0
      %p106 = por %p104, %p105
      %s107 = ssub.s32 %s22, %s48
      %s108 = ssub.s32 %s23, %s44
      %s109 = sor.u32 %s107, %s108
      %p110 = scmp.eq.s32.totalorder %s109, 0
      %s112 = sadd.s32 %s111, 1
      %s113 = scalar_select %p110, %s111, %s112
      %p116 = pneg %p110
      %p117 = scmp.eq.s32.totalorder %s15, 1
      %p118 = por %p116, %p117
      %p119 = scmp.ne.s32.totalorder %s111, %s114
      %p120 = scmp.eq.s32.totalorder %s15, 0
      %p121 = por %p119, %p120
      %p122 = scmp.ne.s32.totalorder %s111, %s114
      %p123 = scmp.eq.s32.totalorder %s20, 1
      %p124 = por %p122, %p123
      %p125 = scmp.ne.s32.totalorder %s114, %s115
      %p126 = scmp.eq.s32.totalorder %s20, 0
      %p127 = por %p125, %p126
      %p128 = scmp.ne.s32.totalorder %s114, %s115
      %p129 = scmp.eq.s32.totalorder %s21, 1
      %p130 = por %p128, %p129
      %p132 = scmp.ne.s32.totalorder %s115, %s131
      %p133 = scmp.eq.s32.totalorder %s21, 0
      %p134 = por %p132, %p133
      %p135 = scmp.le.s32.totalorder 1, %s15
      %p136 = scmp.lt.s32.totalorder %s15, 3
      %p137 = pnand %p135, %p136
      %p138 = pneg %p137
      // Predicated region
      $region9: #{tpu_custom_call.1} parent=5 // pred_check
        _
      $region10: #{tpu_custom_call.1} parent=5 // pred_check_branch
        %140 = sbr.rel (%p137) target = $region12
      $region11: #{tpu_custom_call.1} parent=5 // pred_region
        %s141 = ssub.s32 %s15, 1
        // Predicated region
        $region13: #{tpu_custom_call.1} parent=11 // pred_check
          %p142 = pneg %p99
        $region14: #{tpu_custom_call.1} parent=11 // pred_check_branch
          %144 = sbr.rel (%p142) target = $region16
        $region15: #{tpu_custom_call.1} parent=11 // pred_region
          %s145 = smul.u32 2, %s27
          %s147 = ssub.s32 128, 128
          %148 = vsyncadd [#allocation7], %s147
          %s149 = sadd.s32 %s29, %s145
          %s150 = smul.addr %s149, 64
          %s151 = scalar_lea.hbm %s1, %s150
          %s152 = sshll.u32 [#allocation6], 4
          %s153 = int_to_ptr.vmem [resolvable:$true] %s152
          %158 = dma.hbm_to_vmem [thread:$0]  %s151, 128, %s153, [#allocation7], 64, 64, 4
        $region16: #{tpu_custom_call.1} parent=11 // pred_fallthru
          _
      $region12: #{tpu_custom_call.1} parent=5 // pred_fallthru
        _
      %p159 = scmp.lt.s32.totalorder %s15, 2
      // Predicated region
      $region17: #{tpu_custom_call.1} parent=5 // pred_check
        %p160 = pneg %p159
      $region18: #{tpu_custom_call.1} parent=5 // pred_check_branch
        %162 = sbr.rel (%p160) target = $region20
      $region19: #{tpu_custom_call.1} parent=5 // pred_region
        // Predicated region
        $region21: #{tpu_custom_call.1} parent=19 // pred_check
          %p163 = pneg %p65
        $region22: #{tpu_custom_call.1} parent=19 // pred_check_branch
          %165 = sbr.rel (%p163) target = $region24
        $region23: #{tpu_custom_call.1} parent=19 // pred_region
          %s166 = sand.u32 %s55, 1
          %s167 = scalar_lea.sflag [#allocation4], %s166
          %s168 = sand.u32 %s55, 1
          %s169 = smul.addr %s168, 32
          %s170 = scalar_lea.vmem [#allocation3], %s169
          %s171 = smul.u32 8, %s25
          %s173 = ssub.s32 512, 512
          %174 = vsyncadd %s167, %s173
          %s175 = sadd.s32 %s24, %s171
          %s176 = smul.addr %s22, 8
          %s177 = sadd.s32 %s175, %s176
          %s178 = smul.addr %s177, 64
          %s179 = scalar_lea.hbm %s0, %s178
          %s180 = sshll.u32 %s170, 4
          %s181 = int_to_ptr.vmem [resolvable:$true] %s180
          %186 = dma.hbm_to_vmem [thread:$0]  %s179, 512, %s181, %s167, 64, 64, 4
        $region24: #{tpu_custom_call.1} parent=19 // pred_fallthru
          _
      $region20: #{tpu_custom_call.1} parent=5 // pred_fallthru
        _
      %p187 = scmp.le.s32.totalorder 1, %s15
      %p188 = scmp.lt.s32.totalorder %s15, 3
      %p189 = pnand %p187, %p188
      %p190 = pneg %p189
      // Predicated region
      $region25: #{tpu_custom_call.1} parent=5 // pred_check
        _
      $region26: #{tpu_custom_call.1} parent=5 // pred_check_branch
        %192 = sbr.rel (%p189) target = $region28
      $region27: #{tpu_custom_call.1} parent=5 // pred_region
        %s193 = ssub.s32 %s15, 1
        %s194 = sand.u32 %s58, 1
        %s195 = scalar_lea.sflag [#allocation4], %s194
        %s196 = sand.u32 %s58, 1
        %s197 = smul.addr %s196, 32
        %s198 = scalar_lea.vmem [#allocation3], %s197
        // Predicated region
        $region29: #{tpu_custom_call.1} parent=27 // pred_check
          %p199 = pneg %p71
        $region30: #{tpu_custom_call.1} parent=27 // pred_check_branch
          %201 = sbr.rel (%p199) target = $region32
        $region31: #{tpu_custom_call.1} parent=27 // pred_region
          %202 = dma.done %s195, 512
        $region32: #{tpu_custom_call.1} parent=27 // pred_fallthru
          _
        // Predicated region
        $region33: #{tpu_custom_call.1} parent=27 // pred_check
          %p203 = pneg %p99
        $region34: #{tpu_custom_call.1} parent=27 // pred_check_branch
          %205 = sbr.rel (%p203) target = $region36
        $region35: #{tpu_custom_call.1} parent=27 // pred_region
          %206 = dma.done [#allocation7], 128
        $region36: #{tpu_custom_call.1} parent=27 // pred_fallthru
          _
        %s207 = sand.u32 %s58, 1
        %s208 = scalar_lea.sflag [#allocation4], %s207
        %s209 = sand.u32 %s58, 1
        %s210 = smul.addr %s209, 32
        %s211 = scalar_lea.vmem [#allocation3], %s210
        %p212 = pneg %p71
        %p213 = pneg %p68
        %p214 = pneg %p99
        %p215 = pneg %p96
        %p216 = pneg %p127
        %p217 = pneg %p124
        %s218 = sand.u32 %s114, 1
        %s219 = scalar_lea.sflag [#allocation5], %s218
        %s220 = sand.u32 %s114, 1
        %s221 = smul.addr %s220, 16
        %s222 = scalar_lea.vmem [#allocation8], %s221
        %s223 = smul.u32 8, %s29
        %s224 = smul.u32 2, %s27
        %s225 = smul.u32 2, %s27
        %p227 = scmp.eq.s32.totalorder %s28, 0
        %p228 = scmp.eq.s32.totalorder %s29, 0
        %p229 = pnand %p227, %p228
        %p230 = pneg %p229
        // Predicated region
        $region37: #{tpu_custom_call.1} parent=27 // pred_check
          _
        $region38: #{tpu_custom_call.1} parent=27 // pred_check_branch
          %232 = sbr.rel (%p229) target = $region40
        $region39: #{tpu_custom_call.1} parent=27 // pred_region
          %vm233 = vcmask 7168
          %234 = vst.msk [vmem:[#allocation2] sm:$0xff] %vm233, 0.0
          %235 = vst.msk [vmem:[#allocation2 + $0x8] sm:$0xff] %vm233, 0.0
        $region40: #{tpu_custom_call.1} parent=27 // pred_fallthru
          _
        %v236 = vld [vmem:[#allocation6] sm:$0xf]
        %v237 = vld [vmem:[#allocation6 + $0x4] sm:$0xf]
        %v238 = vld [vmem:[%s198] sm:$0xf]
        %v239 = vld [vmem:[%s198 + $0x4] sm:$0xf]
        %v240 = vld [vmem:[%s198 + $0x8] sm:$0xf]
        %v241 = vld [vmem:[%s198 + $0xc] sm:$0xf]
        %v242 = vld [vmem:[%s198 + $0x10] sm:$0xf]
        %v243 = vld [vmem:[%s198 + $0x14] sm:$0xf]
        %v244 = vld [vmem:[%s198 + $0x18] sm:$0xf]
        %v245 = vld [vmem:[%s198 + $0x1c] sm:$0xf]
        %v248 = vunpack.c.l.b16 %v236
        %v249 = vunpack.c.l.b16 %v237
        %v250 = vpack.c.b16 %v249, %v248
        %v259 = vunpack.c.l.b16 %v238
        %v260 = vunpack.c.l.b16 %v239
        %v261 = vunpack.c.l.b16 %v240
        %v262 = vunpack.c.l.b16 %v241
        %v263 = vunpack.c.l.b16 %v242
        %v264 = vunpack.c.l.b16 %v243
        %v265 = vunpack.c.l.b16 %v244
        %v266 = vunpack.c.l.b16 %v245
        %v267 = vpack.c.b16 %v260, %v259
        %v268 = vpack.c.b16 %v262, %v261
        %v269 = vpack.c.b16 %v264, %v263
        %v270 = vpack.c.b16 %v266, %v265
        %vm275 = vcmask 523264
        %v277 = vsel %vm275, %v250, 0
        %279 = vmatprep.subr.bf16.mxu0 0
        %280 = vmatpush1.bf16.msra.mxu0 0
        %281 = vmatprep.subr.bf16.mxu0 0
        %282 = vmatpush1.bf16.msra.mxu0 0
        %283 = vmatprep.subr.bf16.mxu0 0
        %284 = vmatpush1.bf16.msra.mxu0 0
        %285 = vmatprep.subr.bf16.mxu0 0
        %286 = vmatpush1.bf16.msra.mxu0 0
        %287 = vmatprep.subr.bf16.mxu0 0
        %288 = vmatpush1.bf16.msra.mxu0 %v270
        %289 = vmatprep.subr.bf16.mxu0 0
        %290 = vmatpush1.bf16.msra.mxu0 %v269
        %291 = vmatprep.subr.bf16.mxu0 0
        %292 = vmatpush1.bf16.msra.mxu0 %v268
        %293 = vmatprep.subr.bf16.mxu0 0
        %294 = vmatpush1.bf16.msra.mxu0 %v267
        %295 = vmatprep.subr.bf16.mxu0 0
        %296 = vmatpush2.bf16.msra.mxu0 0
        %297 = vmatprep.subr.bf16.mxu0 0
        %298 = vmatpush2.bf16.msra.mxu0 0
        %299 = vmatprep.subr.bf16.mxu0 0
        %300 = vmatpush2.bf16.msra.mxu0 0
        %301 = vmatprep.subr.bf16.mxu0 0
        %302 = vmatpush2.bf16.msra.mxu0 0
        %303 = vmatprep.subr.bf16.mxu0 0
        %304 = vmatpush2.bf16.msra.mxu0 0
        %305 = vmatprep.subr.bf16.mxu0 0
        %306 = vmatpush2.bf16.msra.mxu0 0
        %307 = vmatprep.subr.bf16.mxu0 0
        %308 = vmatpush2.bf16.msra.mxu0 0
        %309 = vmatprep.subr.bf16.mxu0 0
        %310 = vmatpush2.bf16.msra.mxu0 0
        %311 = vmatprep.mubr.bf16.mxu0 0
        %312 = vmatmul.mubr.bf16.gmra.mxu0 %v277
        %v313 = vpop.f32.mrf.mxu0
        %v314 = vadd.f32 0.0, %v313
        %v315 = vpop.f32.mrf.mxu0
        %v316 = vpop.f32.mrf.mxu0
        %v317 = vadd.f32 0.0, %v316
        %v318 = vpop.f32.mrf.mxu0
        %319 = vdwg.mxu0
        %v320 = vld [vmem:[#allocation2] sm:$0xff]
        %v321 = vld [vmem:[#allocation2 + $0x8] sm:$0xff]
        %322 = vadd.xlane.f32.xlu0 %v314
        %v323 = vpop.xlane.xlu0 %322
        %324 = vadd.xlane.f32.xlu0 %v317
        %v325 = vpop.xlane.xlu0 %324
        %v326 = vadd.f32 %v320, %v323
        %v327 = vadd.f32 %v321, %v325
        %vm328 = vcmask 7168
        %329 = vst.msk [vmem:[#allocation2] sm:$0xff] %vm328, %v326
        %330 = vst.msk [vmem:[#allocation2 + $0x8] sm:$0xff] %vm328, %v327
        %s331 = smul.u32 %s28, 128
        %s332 = sshra.s32 %s331, 7
        %s333 = sand.u32 %s331, 127
        %s334 = scalar_lea.vmem %s222, %s332 [#allocation8]
        %335 = vst [vmem:[%s334] sm:$0xff] %v314
        %336 = vst [vmem:[%s334 + $0x8] sm:$0xff] %v317
        // Predicated region
        $region41: #{tpu_custom_call.1} parent=27 // pred_check
          _
        $region42: #{tpu_custom_call.1} parent=27 // pred_check_branch
          %338 = sbr.rel (%p229) target = $region44
        $region43: #{tpu_custom_call.1} parent=27 // pred_region
          %v339 = vld [vmem:[#allocation2] sm:$0xff]
          %v340 = vld [vmem:[#allocation2 + $0x8] sm:$0xff]
          %v341 = vmul.f32 %v339, 0.015625
          %v342 = vmul.f32 %v340, 0.015625
          %v343 = vld [vmem:[%s222] sm:$0xff]
          %v344 = vld [vmem:[%s222 + $0x8] sm:$0xff]
          %v345 = vlaneseq
          %v346 = vand.u32 %v345, 127
          %vm347 = vcmp.lt.s32.totalorder %v346, 64
          %349 = vset.pattern.permute.xlu0 0
          %350 = vperm.xlu0 %349, %v341
          %v351 = vpop.permute.xlu0 %350
          %354 = vset.pattern.permute.xlu0 0
          %355 = vperm.xlu0 %354, %v342
          %v356 = vpop.permute.xlu0 %355
          %v358 = vsub.f32 %v343, %v351
          %v359 = vsub.f32 %v344, %v356
          %v360 = vsel %vm347, %v358, 0.0
          %v361 = vsel %vm347, %v359, 0.0
          %v362 = vmul.f32 %v360, %v360
          %v363 = vmul.f32 %v361, %v361
          %364 = vadd.xlane.f32.xlu0 %v362
          %v365 = vpop.xlane.xlu0 %364
          %366 = vadd.xlane.f32.xlu0 %v363
          %v367 = vpop.xlane.xlu0 %366
          %v368 = vadd.f32 %v365, 0.0
          %v369 = vadd.f32 %v367, 0.0
          %v370 = vmul.f32 %v368, 0.015625
          %v371 = vmul.f32 %v369, 0.015625
          %v372 = vadd.f32 %v370, 1e-05
          %v373 = vadd.f32 %v371, 1e-05
          %v374 = vrsqrt.pop %v372
          %v375 = vrsqrt.pop %v373
          %v376 = vmul.f32 %v358, %v374
          %v377 = vmul.f32 %v359, %v375
          %v378 = vmax.f32 %v376, 0.0
          %v379 = vmax.f32 %v377, 0.0
          %380 = vst [vmem:[%s222] sm:$0xff] %v378
          %381 = vst [vmem:[%s222 + $0x8] sm:$0xff] %v379
        $region44: #{tpu_custom_call.1} parent=27 // pred_fallthru
          _
        %s382 = sand.u32 %s114, 1
        %s383 = scalar_lea.sflag [#allocation5], %s382
        %s384 = sand.u32 %s114, 1
        %s385 = smul.addr %s384, 16
        %s386 = scalar_lea.vmem [#allocation8], %s385
        // Predicated region
        $region45: #{tpu_custom_call.1} parent=27 // pred_check
          %p387 = pneg %p124
        $region46: #{tpu_custom_call.1} parent=27 // pred_check_branch
          %389 = sbr.rel (%p387) target = $region48
        $region47: #{tpu_custom_call.1} parent=27 // pred_region
          %s390 = smul.u32 2, %s27
          %s392 = ssub.s32 256, 256
          %393 = vsyncadd %s383, %s392
          %s394 = smul.addr %s26, 2
          %s395 = sadd.s32 %s390, %s394
          %s396 = smul.addr %s395, 128
          %s397 = scalar_lea.hbm %s2, %s396
          %s398 = sshll.u32 %s386, 4
          %s399 = int_to_ptr.vmem [resolvable:$true] %s398
          %404 = dma.vmem_to_hbm [thread:$0]  %s399, 256, %s397, %s383, 128, 128, 8
        $region48: #{tpu_custom_call.1} parent=27 // pred_fallthru
          _
      $region28: #{tpu_custom_call.1} parent=5 // pred_fallthru
        _
      %p405 = scmp.le.s32.totalorder 2, %s15
      // Predicated region
      $region49: #{tpu_custom_call.1} parent=5 // pred_check
        %p406 = pneg %p405
      $region50: #{tpu_custom_call.1} parent=5 // pred_check_branch
        %408 = sbr.rel (%p406) target = $region52
      $region51: #{tpu_custom_call.1} parent=5 // pred_region
        %s409 = ssub.s32 %s15, 2
        // Predicated region
        $region53: #{tpu_custom_call.1} parent=51 // pred_check
          %p410 = pneg %p130
        $region54: #{tpu_custom_call.1} parent=51 // pred_check_branch
          %412 = sbr.rel (%p410) target = $region56
        $region55: #{tpu_custom_call.1} parent=51 // pred_region
          %s413 = sand.u32 %s115, 1
          %s414 = scalar_lea.sflag [#allocation5], %s413
          %s415 = sand.u32 %s115, 1
          %s416 = smul.addr %s415, 16
          %s417 = scalar_lea.vmem [#allocation8], %s416
          %418 = dma.done %s414, 256
        $region56: #{tpu_custom_call.1} parent=51 // pred_fallthru
          _
      $region52: #{tpu_custom_call.1} parent=5 // pred_fallthru
        _
    $region6: #{tpu_custom_call.1} parent=1 // loop_footer
      %s19 = sadd.s32 1, %s15
    $region7: #{tpu_custom_call.1} parent=1 // loop_footer_branch
      %14 = sbr.rel target = $region3
    $region8: #{tpu_custom_call.1} parent=1 // loop_exit
      _
    %419 = vsyncpa [#allocation4], 1
    %s420 = scalar_lea.sflag [#allocation4], 1
    %421 = vsyncpa %s420, 1
    %422 = vsyncpa [#allocation7], 1
    %423 = vsyncpa [#allocation5], 1
    %s424 = scalar_lea.sflag [#allocation5], 1
    %425 = vsyncpa %s424, 1

</llo_original>
